<compile_context>
chip_gen: v6e
topology: v6e:2x2x1
jax: 0.10.0
libtpu: 0.0.40
codegen_flags: <defaults>
</compile_context>

<pallas_src>
import functools

import jax
import jax.numpy as jnp
from jax.experimental import pallas as pl
from jax.experimental.pallas import tpu as pltpu


def es_population_kernel(x_ref, w1_ref, b1_ref, w2_ref, b2_ref,
                         n1_ref, nb1_ref, n2_ref, nb2_ref, o_ref, *, sigma):
    # Perturbed weights for this population member (matches
    # add_noise_to_weights: param = master + sigma * noise). Done in f32 before
    # any downcast so the perturbation survives.
    w1 = w1_ref[...] + sigma * n1_ref[0]          # (In_p, H_p)
    b1 = b1_ref[...] + sigma * nb1_ref[0]         # (1, H_p)
    w2 = w2_ref[...] + sigma * n2_ref[0]          # (H_p, Out_p)
    b2 = b2_ref[...] + sigma * nb2_ref[0]         # (1, Out_p)

    # hidden = relu(x @ W1 + b1): bf16 MXU matmul, f32 accumulation, f32 epilogue.
    h = jnp.dot(x_ref[...].astype(jnp.bfloat16), w1.astype(jnp.bfloat16),
                preferred_element_type=jnp.float32)
    h = jnp.maximum(h + b1, 0.0)

    # out = hidden @ W2 + b2
    o = jnp.dot(h.astype(jnp.bfloat16), w2.astype(jnp.bfloat16),
                preferred_element_type=jnp.float32)
    o_ref[0] = (o + b2).astype(o_ref.dtype)


def _round_up(n, m):
    return ((n + m - 1) // m) * m


def es_population_forward(x, w1, b1, w2, b2, n_w1, n_b1, n_w2, n_b2, sigma):
    """Evaluate forward(x) for the whole ES population in ONE pallas_call.

    x:    (B, In)       shared input batch
    w1:   (In, H)       base (master) weights, already transposed from PyTorch
    b1:   (H,)
    w2:   (H, Out)
    b2:   (Out,)
    n_w1: (P, In, H)    per-member gaussian noise (same layout as the weights)
    n_b1: (P, H)
    n_w2: (P, H, Out)
    n_b2: (P, Out)
    Returns (P, B, Out): forward(x) under weights (master + sigma * noise[p]).
    """
    B, In = x.shape
    H = w1.shape[1]
    Out = w2.shape[1]
    P = n_w1.shape[0]

    LANE, SUB = 128, 8
    B_p = _round_up(B, SUB)
    In_p = _round_up(In, LANE)
    H_p = _round_up(H, LANE)
    Out_p = _round_up(Out, LANE)

    f32 = jnp.float32
    xp = jnp.pad(x.astype(f32), ((0, B_p - B), (0, In_p - In)))
    w1p = jnp.pad(w1.astype(f32), ((0, In_p - In), (0, H_p - H)))
    b1p = jnp.pad(b1.astype(f32), (0, H_p - H)).reshape(1, H_p)
    w2p = jnp.pad(w2.astype(f32), ((0, H_p - H), (0, Out_p - Out)))
    b2p = jnp.pad(b2.astype(f32), (0, Out_p - Out)).reshape(1, Out_p)
    n1p = jnp.pad(n_w1.astype(f32), ((0, 0), (0, In_p - In), (0, H_p - H)))
    nb1p = jnp.pad(n_b1.astype(f32), ((0, 0), (0, H_p - H))).reshape(P, 1, H_p)
    n2p = jnp.pad(n_w2.astype(f32), ((0, 0), (0, H_p - H), (0, Out_p - Out)))
    nb2p = jnp.pad(n_b2.astype(f32), ((0, 0), (0, Out_p - Out))).reshape(P, 1, Out_p)

    out = pl.pallas_call(
        functools.partial(es_population_kernel, sigma=float(sigma)),
        out_shape=jax.ShapeDtypeStruct((P, B_p, Out_p), f32),
        grid=(P,),
        in_specs=[
            # Grid-invariant blocks: stay resident in VMEM across the population axis.
            pl.BlockSpec((B_p, In_p), lambda p: (0, 0)),
            pl.BlockSpec((In_p, H_p), lambda p: (0, 0)),
            pl.BlockSpec((1, H_p), lambda p: (0, 0)),
            pl.BlockSpec((H_p, Out_p), lambda p: (0, 0)),
            pl.BlockSpec((1, Out_p), lambda p: (0, 0)),
            # Per-member noise slabs: streamed (double-buffered) per grid step.
            pl.BlockSpec((1, In_p, H_p), lambda p: (p, 0, 0)),
            pl.BlockSpec((1, 1, H_p), lambda p: (p, 0, 0)),
            pl.BlockSpec((1, H_p, Out_p), lambda p: (p, 0, 0)),
            pl.BlockSpec((1, 1, Out_p), lambda p: (p, 0, 0)),
        ],
        # Lane-dense output (Out padded to 128) -> unmasked stores.
        out_specs=pl.BlockSpec((1, B_p, Out_p), lambda p: (p, 0, 0)),
        compiler_params=pltpu.CompilerParams(
            dimension_semantics=("parallel",)),
    )(xp, w1p, b1p, w2p, b2p, n1p, nb1p, n2p, nb2p)

    return out[:, :B, :Out]


def evolution_strategies_forward(x, w1, b1, w2, b2):
    """Plain forward(x) with the current (master) weights: P=1, zero noise."""
    In, H = w1.shape
    Out = w2.shape[1]
    z_w1 = jnp.zeros((1, In, H), jnp.float32)
    z_b1 = jnp.zeros((1, H), jnp.float32)
    z_w2 = jnp.zeros((1, H, Out), jnp.float32)
    z_b2 = jnp.zeros((1, Out), jnp.float32)
    return es_population_forward(x, w1, b1, w2, b2, z_w1, z_b1, z_w2, z_b2, 0.0)[0]


if __name__ == "__main__":
    # Small shapes consistent with __init__(inputs, hidden, outputs, target, population)
    batch, inputs, hidden, outputs = 2, 8, 32, 4
    population = 16
    sigma = 0.1  # module default

    key = jax.random.PRNGKey(0)
    kx, kw1, kb1, kw2, kb2, kn1, knb1, kn2, knb2 = jax.random.split(key, 9)

    x = jax.random.normal(kx, (batch, inputs), dtype=jnp.float32)
    # Deterministic synthetic master parameters (built directly in transposed
    # (in, out) layout).
    w1 = jax.random.normal(kw1, (inputs, hidden), dtype=jnp.float32) * 0.1
    b1 = jax.random.normal(kb1, (hidden,), dtype=jnp.float32) * 0.1
    w2 = jax.random.normal(kw2, (hidden, outputs), dtype=jnp.float32) * 0.1
    b2 = jax.random.normal(kb2, (outputs,), dtype=jnp.float32) * 0.1

    # Per-member population noise (stands in for populate()'s np.random.randn).
    n_w1 = jax.random.normal(kn1, (population, inputs, hidden), dtype=jnp.float32)
    n_b1 = jax.random.normal(knb1, (population, hidden), dtype=jnp.float32)
    n_w2 = jax.random.normal(kn2, (population, hidden, outputs), dtype=jnp.float32)
    n_b2 = jax.random.normal(knb2, (population, outputs), dtype=jnp.float32)

    # --- population forward: one kernel evaluates all P perturbed models ---
    out_pop = es_population_forward(x, w1, b1, w2, b2,
                                    n_w1, n_b1, n_w2, n_b2, sigma)
    out_pop = jax.block_until_ready(out_pop)

    # Pure-JAX f32 reference of the same semantics
    # (add_noise_to_weights followed by forward, for each member).
    w1_all = w1[None] + sigma * n_w1
    b1_all = b1[None] + sigma * n_b1
    w2_all = w2[None] + sigma * n_w2
    b2_all = b2[None] + sigma * n_b2
    h_ref = jnp.maximum(jnp.einsum('bi,pih->pbh', x, w1_all) + b1_all[:, None, :], 0.0)
    ref_pop = jnp.einsum('pbh,pho->pbo', h_ref, w2_all) + b2_all[:, None, :]

    assert out_pop.shape == (population, batch, outputs)
    # bf16 matmul inputs with f32 accumulation -> loose-ish tolerance vs f32 ref.
    assert jnp.allclose(out_pop, ref_pop, atol=3e-2, rtol=3e-2)

    # --- base forward (current master weights, no noise) ---
    out_base = jax.block_until_ready(evolution_strategies_forward(x, w1, b1, w2, b2))
    ref_base = jnp.maximum(x @ w1 + b1, 0.0) @ w2 + b2
    assert out_base.shape == (batch, outputs)
    assert jnp.allclose(out_base, ref_base, atol=3e-2, rtol=3e-2)

    # TODO(synk): populate / log_reward / evolve are host-side numpy ES state
    # management (reward bookkeeping, learning-rate/sigma schedule); they have
    # no forward-pass compute and are not kernelized. Noise is passed in as an
    # array (matching np.random.randn semantics) rather than generated
    # in-kernel via pltpu.prng_* so the reference check stays exact.
    print("KERNEL_OK")
</pallas_src>

<mosaic_0001>
module attributes {stable_mosaic.version = 11 : i64} {
  func.func @es_population_kernel(%arg0: i32, %arg1: memref<8x128xf32, #tpu.memory_space<vmem>>, %arg2: memref<128x128xf32, #tpu.memory_space<vmem>>, %arg3: memref<1x128xf32, #tpu.memory_space<vmem>>, %arg4: memref<128x128xf32, #tpu.memory_space<vmem>>, %arg5: memref<1x128xf32, #tpu.memory_space<vmem>>, %arg6: memref<1x128x128xf32, #tpu.memory_space<vmem>>, %arg7: memref<1x1x128xf32, #tpu.memory_space<vmem>>, %arg8: memref<1x128x128xf32, #tpu.memory_space<vmem>>, %arg9: memref<1x1x128xf32, #tpu.memory_space<vmem>>, %arg10: memref<1x8x128xf32, #tpu.memory_space<vmem>>) attributes {dimension_semantics = [#tpu.dimension_semantics<parallel>], iteration_bounds = array<i64: 16>, scalar_prefetch = 0 : i64, scratch_operands = 0 : i64, tpu.core_type = #tpu.core_type<tc>, window_params = [{pipeline_mode = #tpu.pipeline_mode<synchronous>, transform_indices = @transform_0, window_bounds = array<i64: 8, 128>}, {pipeline_mode = #tpu.pipeline_mode<synchronous>, transform_indices = @transform_1, window_bounds = array<i64: 128, 128>}, {pipeline_mode = #tpu.pipeline_mode<synchronous>, transform_indices = @transform_2, window_bounds = array<i64: 1, 128>}, {pipeline_mode = #tpu.pipeline_mode<synchronous>, transform_indices = @transform_3, window_bounds = array<i64: 128, 128>}, {pipeline_mode = #tpu.pipeline_mode<synchronous>, transform_indices = @transform_4, window_bounds = array<i64: 1, 128>}, {transform_indices = @transform_5, window_bounds = array<i64: 1, 128, 128>}, {transform_indices = @transform_6, window_bounds = array<i64: 1, 1, 128>}, {transform_indices = @transform_7, window_bounds = array<i64: 1, 128, 128>}, {transform_indices = @transform_8, window_bounds = array<i64: 1, 1, 128>}, {transform_indices = @transform_9, window_bounds = array<i64: 1, 8, 128>}]} {
    %c0 = arith.constant 0 : index
    %c0_0 = arith.constant 0 : index
    %0 = vector.load %arg2[%c0, %c0_0] : memref<128x128xf32, #tpu.memory_space<vmem>>, vector<128x128xf32>
    %c0_1 = arith.constant 0 : index
    %c0_2 = arith.constant 0 : index
    %c0_3 = arith.constant 0 : index
    %1 = vector.load %arg6[%c0_1, %c0_2, %c0_3] : memref<1x128x128xf32, #tpu.memory_space<vmem>>, vector<1x128x128xf32>
    %2 = vector.shape_cast %1 : vector<1x128x128xf32> to vector<128x128xf32>
    %cst = arith.constant 1.000000e-01 : f32
    %3 = vector.broadcast %cst : f32 to vector<128x128xf32>
    %4 = arith.mulf %3, %2 : vector<128x128xf32>
    %5 = arith.addf %0, %4 : vector<128x128xf32>
    %c0_4 = arith.constant 0 : index
    %c0_5 = arith.constant 0 : index
    %6 = vector.load %arg3[%c0_4, %c0_5] : memref<1x128xf32, #tpu.memory_space<vmem>>, vector<1x128xf32>
    %c0_6 = arith.constant 0 : index
    %c0_7 = arith.constant 0 : index
    %c0_8 = arith.constant 0 : index
    %7 = vector.load %arg7[%c0_6, %c0_7, %c0_8] : memref<1x1x128xf32, #tpu.memory_space<vmem>>, vector<1x1x128xf32>
    %8 = vector.shape_cast %7 : vector<1x1x128xf32> to vector<1x128xf32>
    %cst_9 = arith.constant 1.000000e-01 : f32
    %9 = vector.broadcast %cst_9 : f32 to vector<1x128xf32>
    %10 = arith.mulf %9, %8 : vector<1x128xf32>
    %11 = arith.addf %6, %10 : vector<1x128xf32>
    %c0_10 = arith.constant 0 : index
    %c0_11 = arith.constant 0 : index
    %12 = vector.load %arg4[%c0_10, %c0_11] : memref<128x128xf32, #tpu.memory_space<vmem>>, vector<128x128xf32>
    %c0_12 = arith.constant 0 : index
    %c0_13 = arith.constant 0 : index
    %c0_14 = arith.constant 0 : index
    %13 = vector.load %arg8[%c0_12, %c0_13, %c0_14] : memref<1x128x128xf32, #tpu.memory_space<vmem>>, vector<1x128x128xf32>
    %14 = vector.shape_cast %13 : vector<1x128x128xf32> to vector<128x128xf32>
    %cst_15 = arith.constant 1.000000e-01 : f32
    %15 = vector.broadcast %cst_15 : f32 to vector<128x128xf32>
    %16 = arith.mulf %15, %14 : vector<128x128xf32>
    %17 = arith.addf %12, %16 : vector<128x128xf32>
    %c0_16 = arith.constant 0 : index
    %c0_17 = arith.constant 0 : index
    %18 = vector.load %arg5[%c0_16, %c0_17] : memref<1x128xf32, #tpu.memory_space<vmem>>, vector<1x128xf32>
    %c0_18 = arith.constant 0 : index
    %c0_19 = arith.constant 0 : index
    %c0_20 = arith.constant 0 : index
    %19 = vector.load %arg9[%c0_18, %c0_19, %c0_20] : memref<1x1x128xf32, #tpu.memory_space<vmem>>, vector<1x1x128xf32>
    %20 = vector.shape_cast %19 : vector<1x1x128xf32> to vector<1x128xf32>
    %cst_21 = arith.constant 1.000000e-01 : f32
    %21 = vector.broadcast %cst_21 : f32 to vector<1x128xf32>
    %22 = arith.mulf %21, %20 : vector<1x128xf32>
    %23 = arith.addf %18, %22 : vector<1x128xf32>
    %c0_22 = arith.constant 0 : index
    %c0_23 = arith.constant 0 : index
    %24 = vector.load %arg1[%c0_22, %c0_23] : memref<8x128xf32, #tpu.memory_space<vmem>>, vector<8x128xf32>
    %25 = arith.truncf %24 : vector<8x128xf32> to vector<8x128xbf16>
    %26 = arith.truncf %5 : vector<128x128xf32> to vector<128x128xbf16>
    %cst_24 = arith.constant dense<0.000000e+00> : vector<8x128xf32>
    %27 = tpu.matmul %25, %26, %cst_24 {dimension_numbers = #tpu.dot_dimension_numbers<[1], [0], [0], [1], [0, 0, 1, 1], [], []>} : vector<8x128xbf16>, vector<128x128xbf16>, vector<8x128xf32> -> vector<8x128xf32>
    %28 = vector.broadcast %11 : vector<1x128xf32> to vector<8x128xf32>
    %29 = arith.addf %27, %28 : vector<8x128xf32>
    %cst_25 = arith.constant 0.000000e+00 : f32
    %30 = vector.broadcast %cst_25 : f32 to vector<8x128xf32>
    %31 = arith.maximumf %29, %30 : vector<8x128xf32>
    %32 = arith.truncf %31 : vector<8x128xf32> to vector<8x128xbf16>
    %33 = arith.truncf %17 : vector<128x128xf32> to vector<128x128xbf16>
    %cst_26 = arith.constant dense<0.000000e+00> : vector<8x128xf32>
    %34 = tpu.matmul %32, %33, %cst_26 {dimension_numbers = #tpu.dot_dimension_numbers<[1], [0], [0], [1], [0, 0, 1, 1], [], []>} : vector<8x128xbf16>, vector<128x128xbf16>, vector<8x128xf32> -> vector<8x128xf32>
    %35 = vector.broadcast %23 : vector<1x128xf32> to vector<8x128xf32>
    %36 = arith.addf %34, %35 : vector<8x128xf32>
    %c0_27 = arith.constant 0 : index
    %c0_28 = arith.constant 0 : index
    %c0_29 = arith.constant 0 : index
    %37 = vector.load %arg10[%c0_27, %c0_28, %c0_29] : memref<1x8x128xf32, #tpu.memory_space<vmem>>, vector<1x8x128xf32>
    %38 = vector.shape_cast %37 : vector<1x8x128xf32> to vector<8x128xf32>
    %39 = vector.shape_cast %36 : vector<8x128xf32> to vector<1x8x128xf32>
    tpu.vector_store %arg10[%c0_27, %c0_28, %c0_29], %39 {strides = array<i32>} : memref<1x8x128xf32, #tpu.memory_space<vmem>>, vector<1x8x128xf32>,
    return
  }
  func.func @transform_0(%arg0: i32) -> (i32, i32) {
    %c0_i32 = arith.constant 0 : i32
    %c0_i32_0 = arith.constant 0 : i32
    %c0_i32_1 = arith.constant 0 : i32
    return %c0_i32, %c0_i32_0 : i32, i32
  }
  func.func @transform_1(%arg0: i32) -> (i32, i32) {
    %c0_i32 = arith.constant 0 : i32
    %c0_i32_0 = arith.constant 0 : i32
    %c0_i32_1 = arith.constant 0 : i32
    return %c0_i32, %c0_i32_0 : i32, i32
  }
  func.func @transform_2(%arg0: i32) -> (i32, i32) {
    %c0_i32 = arith.constant 0 : i32
    %c0_i32_0 = arith.constant 0 : i32
    %c0_i32_1 = arith.constant 0 : i32
    return %c0_i32, %c0_i32_0 : i32, i32
  }
  func.func @transform_3(%arg0: i32) -> (i32, i32) {
    %c0_i32 = arith.constant 0 : i32
    %c0_i32_0 = arith.constant 0 : i32
    %c0_i32_1 = arith.constant 0 : i32
    return %c0_i32, %c0_i32_0 : i32, i32
  }
  func.func @transform_4(%arg0: i32) -> (i32, i32) {
    %c0_i32 = arith.constant 0 : i32
    %c0_i32_0 = arith.constant 0 : i32
    %c0_i32_1 = arith.constant 0 : i32
    return %c0_i32, %c0_i32_0 : i32, i32
  }
  func.func @transform_5(%arg0: i32) -> (i32, i32, i32) {
    %c0_i32 = arith.constant 0 : i32
    %c0_i32_0 = arith.constant 0 : i32
    %c0_i32_1 = arith.constant 0 : i32
    return %arg0, %c0_i32, %c0_i32_0 : i32, i32, i32
  }
  func.func @transform_6(%arg0: i32) -> (i32, i32, i32) {
    %c0_i32 = arith.constant 0 : i32
    %c0_i32_0 = arith.constant 0 : i32
    %c0_i32_1 = arith.constant 0 : i32
    return %arg0, %c0_i32, %c0_i32_0 : i32, i32, i32
  }
  func.func @transform_7(%arg0: i32) -> (i32, i32, i32) {
    %c0_i32 = arith.constant 0 : i32
    %c0_i32_0 = arith.constant 0 : i32
    %c0_i32_1 = arith.constant 0 : i32
    return %arg0, %c0_i32, %c0_i32_0 : i32, i32, i32
  }
  func.func @transform_8(%arg0: i32) -> (i32, i32, i32) {
    %c0_i32 = arith.constant 0 : i32
    %c0_i32_0 = arith.constant 0 : i32
    %c0_i32_1 = arith.constant 0 : i32
    return %arg0, %c0_i32, %c0_i32_0 : i32, i32, i32
  }
  func.func @transform_9(%arg0: i32) -> (i32, i32, i32) {
    %c0_i32 = arith.constant 0 : i32
    %c0_i32_0 = arith.constant 0 : i32
    %c0_i32_1 = arith.constant 0 : i32
    return %arg0, %c0_i32, %c0_i32_0 : i32, i32, i32
  }
}

</mosaic_0001>

<llo_original>
// kernel: tpu_custom_call.1
$region0: #{tpu_custom_call.1}
  #allocation0 [shape = 'u32[]', space=smem, size = 0x4, offset = 0x4, fixed_abs, tag = 'smem constant byte address 0x4 - core index']
  #allocation1 [shape = 'u32[144,128]{1,0:T(1,128)}', space=vmem, size = 0x12000, scoped, tag = 'internal scratch']
  %s0 = inlined_call_operand.hbm [shape: f32[8,128], index: 0, kind: input, shape index: {}]
  %s1 = inlined_call_operand.hbm [shape: f32[128,128], index: 1, kind: input, shape index: {}]
  %s2 = inlined_call_operand.vmem [shape: f32[1,128], index: 2, kind: input, shape index: {}]
  %s3 = inlined_call_operand.hbm [shape: f32[128,128], index: 3, kind: input, shape index: {}]
  %s4 = inlined_call_operand.vmem [shape: f32[1,128], index: 4, kind: input, shape index: {}]
  %s5 = inlined_call_operand.hbm [shape: f32[16,128,128], index: 5, kind: input, shape index: {}]
  %s6 = inlined_call_operand.hbm [shape: f32[16,1,128], index: 6, kind: input, shape index: {}]
  %s7 = inlined_call_operand.hbm [shape: f32[16,128,128], index: 7, kind: input, shape index: {}]
  %s8 = inlined_call_operand.hbm [shape: f32[16,1,128], index: 8, kind: input, shape index: {}]
  %s9 = inlined_call_operand.hbm [shape: f32[16,8,128], index: 9, kind: output, shape index: {}]
  %s10 = sld [smem:[#allocation0]]
  $region97: #{tpu_custom_call.1} parent=0
    _
  %s12 = ssub.s32 1, %s10
  %s13 = scalar_select 0, %s12, %s10
  $region1: #{tpu_custom_call.1} parent=0
    #allocation2 [shape = 'u8[4096]{0}', space=vmem, size = 0x1000, scoped, tag = 'input window, operand 0, single buffered']
    #allocation3 [shape = 's32[2]{0}', space=sflag, size = 0x8, scoped, tag = 'scoped memory for tpu_custom_call.1']
    #allocation4 [shape = 's32[2]{0}', space=sflag, size = 0x8, scoped, tag = 'scoped memory for tpu_custom_call.1']
    #allocation5 [shape = 'u8[65536]{0}', space=vmem, size = 0x10000, scoped, tag = 'input window, operand 1, single buffered']
    #allocation6 [shape = 's32[1]{0}', space=sflag, size = 0x4, scoped, tag = 'scoped memory for tpu_custom_call.1']
    #allocation7 [shape = 'u8[65536]{0}', space=vmem, size = 0x10000, scoped, tag = 'input window, operand 3, single buffered']
    #allocation8 [shape = 'u8[131072]{0}', space=vmem, size = 0x20000, scoped, tag = 'input window, operand 5']
    #allocation9 [shape = 's32[2]{0}', space=sflag, size = 0x8, scoped, tag = 'scoped memory for tpu_custom_call.1']
    #allocation10 [shape = 'u8[1024]{0}', space=vmem, size = 0x400, scoped, tag = 'input window, operand 6']
    #allocation11 [shape = 'u8[131072]{0}', space=vmem, size = 0x20000, scoped, tag = 'input window, operand 7']
    #allocation12 [shape = 's32[2]{0}', space=sflag, size = 0x8, scoped, tag = 'scoped memory for tpu_custom_call.1']
    #allocation13 [shape = 'u8[1024]{0}', space=vmem, size = 0x400, scoped, tag = 'input window, operand 8']
    #allocation14 [shape = 'u8[8192]{0}', space=vmem, size = 0x2000, scoped, tag = 'output window, operand 0']
    %14 = vsyncpa [#allocation3], 0
    %15 = vsyncpa [#allocation6], 0
    %16 = vsyncpa [#allocation9], 0
    %s17 = scalar_lea.sflag [#allocation9], 1
    %18 = vsyncpa %s17, 0
    %19 = vsyncpa [#allocation12], 0
    %s20 = scalar_lea.sflag [#allocation12], 1
    %21 = vsyncpa %s20, 0
    %22 = vsyncpa [#allocation4], 0
    %s23 = scalar_lea.sflag [#allocation4], 1
    %24 = vsyncpa %s23, 0
    loop: start=0, step=1, limit=18
    $region2: #{tpu_custom_call.1} parent=1 // loop_pre_header
      _
    $region3: #{tpu_custom_call.1} parent=1 // loop_header
      %s26 = sphi 0, %s30
      %p27 = scmp.ge.s32.totalorder %s26, 18
      %s34 = sphi 0, %s34
      %s36 = sphi 0, %s34
      %s37 = sphi 0, %s36
      %s51 = sphi 0, %s37
      %s55 = sphi 0, %s55
      %s57 = sphi 0, %s55
      %s58 = sphi 0, %s57
      %s72 = sphi 0, %s58
      %s76 = sphi 0, %s76
      %s78 = sphi 0, %s76
      %s79 = sphi 0, %s78
      %s93 = sphi 0, %s79
      %s97 = sphi 0, %s97
      %s99 = sphi 0, %s97
      %s100 = sphi 0, %s99
      %s114 = sphi 0, %s100
      %s118 = sphi 0, %s118
      %s120 = sphi 0, %s118
      %s121 = sphi 0, %s120
      %s135 = sphi 0, %s121
      %s141 = sphi 0, %s143
      %s144 = sphi 0, %s141
      %s145 = sphi 0, %s144
      %s161 = sphi 0, %s145
      %s167 = sphi 0, %s169
      %s170 = sphi 0, %s167
      %s171 = sphi 0, %s170
      %s187 = sphi 0, %s171
      %s193 = sphi 0, %s195
      %s196 = sphi 0, %s193
      %s197 = sphi 0, %s196
      %s213 = sphi 0, %s197
      %s219 = sphi 0, %s221
      %s222 = sphi 0, %s219
      %s223 = sphi 0, %s222
      %s239 = sphi 0, %s223
      %s245 = sphi 0, %s247
      %s248 = sphi 0, %s245
      %s249 = sphi 0, %s248
      %s265 = sphi 0, %s249
    $region4: #{tpu_custom_call.1} parent=1 // loop_header_branch
      %29 = sbr.rel (%p27) target = $region8
    $region5: #{tpu_custom_call.1} parent=1 // loop_body
      %s31 = ssub.s32 %s26, 1
      %s32 = ssub.s32 %s26, 2
      %s33 = sadd.s32 %s26, 1
      %s35 = sadd.s32 %s34, 1
      %p38 = scmp.eq.s32.totalorder %s26, 15
      %p39 = scmp.ne.s32.totalorder %s34, %s36
      %p40 = scmp.eq.s32.totalorder %s26, 0
      %p41 = por %p39, %p40
      %p42 = scmp.ne.s32.totalorder %s34, %s36
      %p43 = scmp.eq.s32.totalorder %s31, 15
      %p44 = por %p42, %p43
      %p45 = scmp.ne.s32.totalorder %s36, %s37
      %p46 = scmp.eq.s32.totalorder %s31, 0
      %p47 = por %p45, %p46
      %p48 = scmp.ne.s32.totalorder %s36, %s37
      %p49 = scmp.eq.s32.totalorder %s32, 15
      %p50 = por %p48, %p49
      %p52 = scmp.ne.s32.totalorder %s37, %s51
      %p53 = scmp.eq.s32.totalorder %s32, 0
      %p54 = por %p52, %p53
      %s56 = sadd.s32 %s55, 1
      %p59 = scmp.eq.s32.totalorder %s26, 15
      %p60 = scmp.ne.s32.totalorder %s55, %s57
      %p61 = scmp.eq.s32.totalorder %s26, 0
      %p62 = por %p60, %p61
      %p63 = scmp.ne.s32.totalorder %s55, %s57
      %p64 = scmp.eq.s32.totalorder %s31, 15
      %p65 = por %p63, %p64
      %p66 = scmp.ne.s32.totalorder %s57, %s58
      %p67 = scmp.eq.s32.totalorder %s31, 0
      %p68 = por %p66, %p67
      %p69 = scmp.ne.s32.totalorder %s57, %s58
      %p70 = scmp.eq.s32.totalorder %s32, 15
      %p71 = por %p69, %p70
      %p73 = scmp.ne.s32.totalorder %s58, %s72
      %p74 = scmp.eq.s32.totalorder %s32, 0
      %p75 = por %p73, %p74
      %s77 = sadd.s32 %s76, 1
      %p80 = scmp.eq.s32.totalorder %s26, 15
      %p81 = scmp.ne.s32.totalorder %s76, %s78
      %p82 = scmp.eq.s32.totalorder %s26, 0
      %p83 = por %p81, %p82
      %p84 = scmp.ne.s32.totalorder %s76, %s78
      %p85 = scmp.eq.s32.totalorder %s31, 15
      %p86 = por %p84, %p85
      %p87 = scmp.ne.s32.totalorder %s78, %s79
      %p88 = scmp.eq.s32.totalorder %s31, 0
      %p89 = por %p87, %p88
      %p90 = scmp.ne.s32.totalorder %s78, %s79
      %p91 = scmp.eq.s32.totalorder %s32, 15
      %p92 = por %p90, %p91
      %p94 = scmp.ne.s32.totalorder %s79, %s93
      %p95 = scmp.eq.s32.totalorder %s32, 0
      %p96 = por %p94, %p95
      %s98 = sadd.s32 %s97, 1
      %p101 = scmp.eq.s32.totalorder %s26, 15
      %p102 = scmp.ne.s32.totalorder %s97, %s99
      %p103 = scmp.eq.s32.totalorder %s26, 0
      %p104 = por %p102, %p103
      %p105 = scmp.ne.s32.totalorder %s97, %s99
      %p106 = scmp.eq.s32.totalorder %s31, 15
      %p107 = por %p105, %p106
      %p108 = scmp.ne.s32.totalorder %s99, %s100
      %p109 = scmp.eq.s32.totalorder %s31, 0
      %p110 = por %p108, %p109
      %p111 = scmp.ne.s32.totalorder %s99, %s100
      %p112 = scmp.eq.s32.totalorder %s32, 15
      %p113 = por %p111, %p112
      %p115 = scmp.ne.s32.totalorder %s100, %s114
      %p116 = scmp.eq.s32.totalorder %s32, 0
      %p117 = por %p115, %p116
      %s119 = sadd.s32 %s118, 1
      %p122 = scmp.eq.s32.totalorder %s26, 15
      %p123 = scmp.ne.s32.totalorder %s118, %s120
      %p124 = scmp.eq.s32.totalorder %s26, 0
      %p125 = por %p123, %p124
      %p126 = scmp.ne.s32.totalorder %s118, %s120
      %p127 = scmp.eq.s32.totalorder %s31, 15
      %p128 = por %p126, %p127
      %p129 = scmp.ne.s32.totalorder %s120, %s121
      %p130 = scmp.eq.s32.totalorder %s31, 0
      %p131 = por %p129, %p130
      %p132 = scmp.ne.s32.totalorder %s120, %s121
      %p133 = scmp.eq.s32.totalorder %s32, 15
      %p134 = por %p132, %p133
      %p136 = scmp.ne.s32.totalorder %s121, %s135
      %p137 = scmp.eq.s32.totalorder %s32, 0
      %p138 = por %p136, %p137
      %s139 = ssub.s32 %s26, %s33
      %p140 = scmp.eq.s32.totalorder %s139, 0
      %s142 = sadd.s32 %s141, 1
      %s143 = scalar_select %p140, %s141, %s142
      %p146 = pneg %p140
      %p147 = scmp.eq.s32.totalorder %s26, 15
      %p148 = por %p146, %p147
      %p149 = scmp.ne.s32.totalorder %s141, %s144
      %p150 = scmp.eq.s32.totalorder %s26, 0
      %p151 = por %p149, %p150
      %p152 = scmp.ne.s32.totalorder %s141, %s144
      %p153 = scmp.eq.s32.totalorder %s31, 15
      %p154 = por %p152, %p153
      %p155 = scmp.ne.s32.totalorder %s144, %s145
      %p156 = scmp.eq.s32.totalorder %s31, 0
      %p157 = por %p155, %p156
      %p158 = scmp.ne.s32.totalorder %s144, %s145
      %p159 = scmp.eq.s32.totalorder %s32, 15
      %p160 = por %p158, %p159
      %p162 = scmp.ne.s32.totalorder %s145, %s161
      %p163 = scmp.eq.s32.totalorder %s32, 0
      %p164 = por %p162, %p163
      %s165 = ssub.s32 %s26, %s33
      %p166 = scmp.eq.s32.totalorder %s165, 0
      %s168 = sadd.s32 %s167, 1
      %s169 = scalar_select %p166, %s167, %s168
      %p172 = pneg %p166
      %p173 = scmp.eq.s32.totalorder %s26, 15
      %p174 = por %p172, %p173
      %p175 = scmp.ne.s32.totalorder %s167, %s170
      %p176 = scmp.eq.s32.totalorder %s26, 0
      %p177 = por %p175, %p176
      %p178 = scmp.ne.s32.totalorder %s167, %s170
      %p179 = scmp.eq.s32.totalorder %s31, 15
      %p180 = por %p178, %p179
      %p181 = scmp.ne.s32.totalorder %s170, %s171
      %p182 = scmp.eq.s32.totalorder %s31, 0
      %p183 = por %p181, %p182
      %p184 = scmp.ne.s32.totalorder %s170, %s171
      %p185 = scmp.eq.s32.totalorder %s32, 15
      %p186 = por %p184, %p185
      %p188 = scmp.ne.s32.totalorder %s171, %s187
      %p189 = scmp.eq.s32.totalorder %s32, 0
      %p190 = por %p188, %p189
      %s191 = ssub.s32 %s26, %s33
      %p192 = scmp.eq.s32.totalorder %s191, 0
      %s194 = sadd.s32 %s193, 1
      %s195 = scalar_select %p192, %s193, %s194
      %p198 = pneg %p192
      %p199 = scmp.eq.s32.totalorder %s26, 15
      %p200 = por %p198, %p199
      %p201 = scmp.ne.s32.totalorder %s193, %s196
      %p202 = scmp.eq.s32.totalorder %s26, 0
      %p203 = por %p201, %p202
      %p204 = scmp.ne.s32.totalorder %s193, %s196
      %p205 = scmp.eq.s32.totalorder %s31, 15
      %p206 = por %p204, %p205
      %p207 = scmp.ne.s32.totalorder %s196, %s197
      %p208 = scmp.eq.s32.totalorder %s31, 0
      %p209 = por %p207, %p208
      %p210 = scmp.ne.s32.totalorder %s196, %s197
      %p211 = scmp.eq.s32.totalorder %s32, 15
      %p212 = por %p210, %p211
      %p214 = scmp.ne.s32.totalorder %s197, %s213
      %p215 = scmp.eq.s32.totalorder %s32, 0
      %p216 = por %p214, %p215
      %s217 = ssub.s32 %s26, %s33
      %p218 = scmp.eq.s32.totalorder %s217, 0
      %s220 = sadd.s32 %s219, 1
      %s221 = scalar_select %p218, %s219, %s220
      %p224 = pneg %p218
      %p225 = scmp.eq.s32.totalorder %s26, 15
      %p226 = por %p224, %p225
      %p227 = scmp.ne.s32.totalorder %s219, %s222
      %p228 = scmp.eq.s32.totalorder %s26, 0
      %p229 = por %p227, %p228
      %p230 = scmp.ne.s32.totalorder %s219, %s222
      %p231 = scmp.eq.s32.totalorder %s31, 15
      %p232 = por %p230, %p231
      %p233 = scmp.ne.s32.totalorder %s222, %s223
      %p234 = scmp.eq.s32.totalorder %s31, 0
      %p235 = por %p233, %p234
      %p236 = scmp.ne.s32.totalorder %s222, %s223
      %p237 = scmp.eq.s32.totalorder %s32, 15
      %p238 = por %p236, %p237
      %p240 = scmp.ne.s32.totalorder %s223, %s239
      %p241 = scmp.eq.s32.totalorder %s32, 0
      %p242 = por %p240, %p241
      %s243 = ssub.s32 %s26, %s33
      %p244 = scmp.eq.s32.totalorder %s243, 0
      %s246 = sadd.s32 %s245, 1
      %s247 = scalar_select %p244, %s245, %s246
      %p250 = pneg %p244
      %p251 = scmp.eq.s32.totalorder %s26, 15
      %p252 = por %p250, %p251
      %p253 = scmp.ne.s32.totalorder %s245, %s248
      %p254 = scmp.eq.s32.totalorder %s26, 0
      %p255 = por %p253, %p254
      %p256 = scmp.ne.s32.totalorder %s245, %s248
      %p257 = scmp.eq.s32.totalorder %s31, 15
      %p258 = por %p256, %p257
      %p259 = scmp.ne.s32.totalorder %s248, %s249
      %p260 = scmp.eq.s32.totalorder %s31, 0
      %p261 = por %p259, %p260
      %p262 = scmp.ne.s32.totalorder %s248, %s249
      %p263 = scmp.eq.s32.totalorder %s32, 15
      %p264 = por %p262, %p263
      %p266 = scmp.ne.s32.totalorder %s249, %s265
      %p267 = scmp.eq.s32.totalorder %s32, 0
      %p268 = por %p266, %p267
      %p269 = scmp.le.s32.totalorder 1, %s26
      %p270 = scmp.lt.s32.totalorder %s26, 17
      %p271 = pnand %p269, %p270
      %p272 = pneg %p271
      // Predicated region
      $region9: #{tpu_custom_call.1} parent=5 // pred_check
        _
      $region10: #{tpu_custom_call.1} parent=5 // pred_check_branch
        %274 = sbr.rel (%p271) target = $region12
      $region11: #{tpu_custom_call.1} parent=5 // pred_region
        %s275 = ssub.s32 %s26, 1
        // Predicated region
        $region13: #{tpu_custom_call.1} parent=11 // pred_check
          %p276 = pneg %p47
        $region14: #{tpu_custom_call.1} parent=11 // pred_check_branch
          %278 = sbr.rel (%p276) target = $region16
        $region15: #{tpu_custom_call.1} parent=11 // pred_region
          %s280 = ssub.s32 128, 128
          %281 = vsyncadd [#allocation3], %s280
          %s283 = sshll.u32 [#allocation2], 4
          %s284 = int_to_ptr.vmem [resolvable:$true] %s283
          %286 = dma.hbm_to_vmem [thread:$0]  %s0, 128, %s284, [#allocation3]
        $region16: #{tpu_custom_call.1} parent=11 // pred_fallthru
          _
        // Predicated region
        $region17: #{tpu_custom_call.1} parent=11 // pred_check
          %p287 = pneg %p68
        $region18: #{tpu_custom_call.1} parent=11 // pred_check_branch
          %289 = sbr.rel (%p287) target = $region20
        $region19: #{tpu_custom_call.1} parent=11 // pred_region
          %s291 = ssub.s32 2048, 2048
          %292 = vsyncadd [#allocation6], %s291
          %s293 = sshll.u32 [#allocation5], 4
          %s294 = int_to_ptr.vmem [resolvable:$true] %s293
          %299 = dma.hbm_to_vmem [thread:$0]  %s1, 2048, %s294, [#allocation6], 128, 128, 8
        $region20: #{tpu_custom_call.1} parent=11 // pred_fallthru
          _
        // Predicated region
        $region21: #{tpu_custom_call.1} parent=11 // pred_check
          %p300 = pneg %p89
        $region22: #{tpu_custom_call.1} parent=11 // pred_check_branch
          %302 = sbr.rel (%p300) target = $region24
        $region23: #{tpu_custom_call.1} parent=11 // pred_region
          _
        $region24: #{tpu_custom_call.1} parent=11 // pred_fallthru
          _
        // Predicated region
        $region25: #{tpu_custom_call.1} parent=11 // pred_check
          %p303 = pneg %p110
        $region26: #{tpu_custom_call.1} parent=11 // pred_check_branch
          %305 = sbr.rel (%p303) target = $region28
        $region27: #{tpu_custom_call.1} parent=11 // pred_region
          %s307 = ssub.s32 2048, 2048
          %308 = vsyncadd [#allocation6], %s307
          %s309 = sshll.u32 [#allocation7], 4
          %s310 = int_to_ptr.vmem [resolvable:$true] %s309
          %315 = dma.hbm_to_vmem [thread:$0]  %s3, 2048, %s310, [#allocation6], 128, 128, 8
        $region28: #{tpu_custom_call.1} parent=11 // pred_fallthru
          _
        // Predicated region
        $region29: #{tpu_custom_call.1} parent=11 // pred_check
          %p316 = pneg %p131
        $region30: #{tpu_custom_call.1} parent=11 // pred_check_branch
          %318 = sbr.rel (%p316) target = $region32
        $region31: #{tpu_custom_call.1} parent=11 // pred_region
          _
        $region32: #{tpu_custom_call.1} parent=11 // pred_fallthru
          _
      $region12: #{tpu_custom_call.1} parent=5 // pred_fallthru
        _
      %p319 = scmp.lt.s32.totalorder %s26, 16
      // Predicated region
      $region33: #{tpu_custom_call.1} parent=5 // pred_check
        %p320 = pneg %p319
      $region34: #{tpu_custom_call.1} parent=5 // pred_check_branch
        %322 = sbr.rel (%p320) target = $region36
      $region35: #{tpu_custom_call.1} parent=5 // pred_region
        // Predicated region
        $region37: #{tpu_custom_call.1} parent=35 // pred_check
          %p323 = pneg %p151
        $region38: #{tpu_custom_call.1} parent=35 // pred_check_branch
          %325 = sbr.rel (%p323) target = $region40
        $region39: #{tpu_custom_call.1} parent=35 // pred_region
          %s326 = sand.u32 %s26, 1
          %s327 = scalar_lea.sflag [#allocation9], %s326
          %s328 = sand.u32 %s141, 1
          %s329 = smul.addr %s328, 128
          %s330 = scalar_lea.vmem [#allocation8], %s329
          %s332 = ssub.s32 2048, 2048
          %333 = vsyncadd %s327, %s332
          %s334 = smul.addr %s26, 16
          %s335 = smul.addr %s334, 128
          %s336 = scalar_lea.hbm %s5, %s335
          %s337 = sshll.u32 %s330, 4
          %s338 = int_to_ptr.vmem [resolvable:$true] %s337
          %343 = dma.hbm_to_vmem [thread:$0]  %s336, 2048, %s338, %s327, 128, 128, 8
        $region40: #{tpu_custom_call.1} parent=35 // pred_fallthru
          _
        // Predicated region
        $region41: #{tpu_custom_call.1} parent=35 // pred_check
          %p344 = pneg %p177
        $region42: #{tpu_custom_call.1} parent=35 // pred_check_branch
          %346 = sbr.rel (%p344) target = $region44
        $region43: #{tpu_custom_call.1} parent=35 // pred_region
          %s347 = sand.u32 %s26, 1
          %s348 = scalar_lea.sflag [#allocation9], %s347
          %s349 = sand.u32 %s167, 1
          %s350 = scalar_lea.vmem [#allocation10], %s349
          %s352 = ssub.s32 16, 16
          %353 = vsyncadd %s348, %s352
          %s354 = smul.addr %s26, 16
          %s355 = scalar_lea.hbm %s6, %s354
          %s357 = sshll.u32 %s350, 4
          %s358 = int_to_ptr.vmem [resolvable:$true] %s357
          %360 = dma.hbm_to_vmem [thread:$0]  %s355, 16, %s358, %s348
        $region44: #{tpu_custom_call.1} parent=35 // pred_fallthru
          _
        // Predicated region
        $region45: #{tpu_custom_call.1} parent=35 // pred_check
          %p361 = pneg %p203
        $region46: #{tpu_custom_call.1} parent=35 // pred_check_branch
          %363 = sbr.rel (%p361) target = $region48
        $region47: #{tpu_custom_call.1} parent=35 // pred_region
          %s364 = sand.u32 %s26, 1
          %s365 = scalar_lea.sflag [#allocation12], %s364
          %s366 = sand.u32 %s193, 1
          %s367 = smul.addr %s366, 128
          %s368 = scalar_lea.vmem [#allocation11], %s367
          %s370 = ssub.s32 2048, 2048
          %371 = vsyncadd %s365, %s370
          %s372 = smul.addr %s26, 16
          %s373 = smul.addr %s372, 128
          %s374 = scalar_lea.hbm %s7, %s373
          %s375 = sshll.u32 %s368, 4
          %s376 = int_to_ptr.vmem [resolvable:$true] %s375
          %381 = dma.hbm_to_vmem [thread:$0]  %s374, 2048, %s376, %s365, 128, 128, 8
        $region48: #{tpu_custom_call.1} parent=35 // pred_fallthru
          _
        // Predicated region
        $region49: #{tpu_custom_call.1} parent=35 // pred_check
          %p382 = pneg %p229
        $region50: #{tpu_custom_call.1} parent=35 // pred_check_branch
          %384 = sbr.rel (%p382) target = $region52
        $region51: #{tpu_custom_call.1} parent=35 // pred_region
          %s385 = sand.u32 %s26, 1
          %s386 = scalar_lea.sflag [#allocation12], %s385
          %s387 = sand.u32 %s219, 1
          %s388 = scalar_lea.vmem [#allocation13], %s387
          %s390 = ssub.s32 16, 16
          %391 = vsyncadd %s386, %s390
          %s392 = smul.addr %s26, 16
          %s393 = scalar_lea.hbm %s8, %s392
          %s395 = sshll.u32 %s388, 4
          %s396 = int_to_ptr.vmem [resolvable:$true] %s395
          %398 = dma.hbm_to_vmem [thread:$0]  %s393, 16, %s396, %s386
        $region52: #{tpu_custom_call.1} parent=35 // pred_fallthru
          _
      $region36: #{tpu_custom_call.1} parent=5 // pred_fallthru
        _
      %p399 = scmp.le.s32.totalorder 1, %s26
      %p400 = scmp.lt.s32.totalorder %s26, 17
      %p401 = pnand %p399, %p400
      %p402 = pneg %p401
      // Predicated region
      $region53: #{tpu_custom_call.1} parent=5 // pred_check
        _
      $region54: #{tpu_custom_call.1} parent=5 // pred_check_branch
        %404 = sbr.rel (%p401) target = $region56
      $region55: #{tpu_custom_call.1} parent=5 // pred_region
        %s405 = ssub.s32 %s26, 1
        // Predicated region
        $region57: #{tpu_custom_call.1} parent=55 // pred_check
          %p406 = pneg %p47
        $region58: #{tpu_custom_call.1} parent=55 // pred_check_branch
          %408 = sbr.rel (%p406) target = $region60
        $region59: #{tpu_custom_call.1} parent=55 // pred_region
          %409 = dma.done [#allocation3], 128
        $region60: #{tpu_custom_call.1} parent=55 // pred_fallthru
          _
        // Predicated region
        $region61: #{tpu_custom_call.1} parent=55 // pred_check
          %p410 = pneg %p68
        $region62: #{tpu_custom_call.1} parent=55 // pred_check_branch
          %412 = sbr.rel (%p410) target = $region64
        $region63: #{tpu_custom_call.1} parent=55 // pred_region
          %413 = dma.done [#allocation6], 2048
        $region64: #{tpu_custom_call.1} parent=55 // pred_fallthru
          _
        // Predicated region
        $region65: #{tpu_custom_call.1} parent=55 // pred_check
          %p414 = pneg %p110
        $region66: #{tpu_custom_call.1} parent=55 // pred_check_branch
          %416 = sbr.rel (%p414) target = $region68
        $region67: #{tpu_custom_call.1} parent=55 // pred_region
          %417 = dma.done [#allocation6], 2048
        $region68: #{tpu_custom_call.1} parent=55 // pred_fallthru
          _
        %s418 = sand.u32 %s31, 1
        %s419 = scalar_lea.sflag [#allocation9], %s418
        %s420 = sand.u32 %s144, 1
        %s421 = smul.addr %s420, 128
        %s422 = scalar_lea.vmem [#allocation8], %s421
        // Predicated region
        $region69: #{tpu_custom_call.1} parent=55 // pred_check
          %p423 = pneg %p157
        $region70: #{tpu_custom_call.1} parent=55 // pred_check_branch
          %425 = sbr.rel (%p423) target = $region72
        $region71: #{tpu_custom_call.1} parent=55 // pred_region
          %426 = dma.done %s419, 2048
        $region72: #{tpu_custom_call.1} parent=55 // pred_fallthru
          _
        %s427 = sand.u32 %s31, 1
        %s428 = scalar_lea.sflag [#allocation9], %s427
        %s429 = sand.u32 %s170, 1
        %s430 = scalar_lea.vmem [#allocation10], %s429
        // Predicated region
        $region73: #{tpu_custom_call.1} parent=55 // pred_check
          %p431 = pneg %p183
        $region74: #{tpu_custom_call.1} parent=55 // pred_check_branch
          %433 = sbr.rel (%p431) target = $region76
        $region75: #{tpu_custom_call.1} parent=55 // pred_region
          %434 = dma.done %s428, 16
        $region76: #{tpu_custom_call.1} parent=55 // pred_fallthru
          _
        %s435 = sand.u32 %s31, 1
        %s436 = scalar_lea.sflag [#allocation12], %s435
        %s437 = sand.u32 %s196, 1
        %s438 = smul.addr %s437, 128
        %s439 = scalar_lea.vmem [#allocation11], %s438
        // Predicated region
        $region77: #{tpu_custom_call.1} parent=55 // pred_check
          %p440 = pneg %p209
        $region78: #{tpu_custom_call.1} parent=55 // pred_check_branch
          %442 = sbr.rel (%p440) target = $region80
        $region79: #{tpu_custom_call.1} parent=55 // pred_region
          %443 = dma.done %s436, 2048
        $region80: #{tpu_custom_call.1} parent=55 // pred_fallthru
          _
        %s444 = sand.u32 %s31, 1
        %s445 = scalar_lea.sflag [#allocation12], %s444
        %s446 = sand.u32 %s222, 1
        %s447 = scalar_lea.vmem [#allocation13], %s446
        // Predicated region
        $region81: #{tpu_custom_call.1} parent=55 // pred_check
          %p448 = pneg %p235
        $region82: #{tpu_custom_call.1} parent=55 // pred_check_branch
          %450 = sbr.rel (%p448) target = $region84
        $region83: #{tpu_custom_call.1} parent=55 // pred_region
          %451 = dma.done %s445, 16
        $region84: #{tpu_custom_call.1} parent=55 // pred_fallthru
          _
        %p452 = pneg %p47
        %p453 = pneg %p44
        %p454 = pneg %p68
        %p455 = pneg %p65
        %p456 = pneg %p89
        %p457 = pneg %p86
        %p458 = pneg %p110
        %p459 = pneg %p107
        %p460 = pneg %p131
        %p461 = pneg %p128
        %s462 = sand.u32 %s31, 1
        %s463 = scalar_lea.sflag [#allocation9], %s462
        %s464 = sand.u32 %s144, 1
        %s465 = smul.addr %s464, 128
        %s466 = scalar_lea.vmem [#allocation8], %s465
        %p467 = pneg %p157
        %p468 = pneg %p154
        %s469 = sand.u32 %s31, 1
        %s470 = scalar_lea.sflag [#allocation9], %s469
        %s471 = sand.u32 %s170, 1
        %s472 = scalar_lea.vmem [#allocation10], %s471
        %p473 = pneg %p183
        %p474 = pneg %p180
        %s475 = sand.u32 %s31, 1
        %s476 = scalar_lea.sflag [#allocation12], %s475
        %s477 = sand.u32 %s196, 1
        %s478 = smul.addr %s477, 128
        %s479 = scalar_lea.vmem [#allocation11], %s478
        %p480 = pneg %p209
        %p481 = pneg %p206
        %s482 = sand.u32 %s31, 1
        %s483 = scalar_lea.sflag [#allocation12], %s482
        %s484 = sand.u32 %s222, 1
        %s485 = scalar_lea.vmem [#allocation13], %s484
        %p486 = pneg %p235
        %p487 = pneg %p232
        %p488 = pneg %p261
        %p489 = pneg %p258
        %s490 = sand.u32 %s248, 1
        %s491 = scalar_lea.sflag [#allocation4], %s490
        %s492 = sand.u32 %s248, 1
        %s493 = smul.addr %s492, 8
        %s494 = scalar_lea.vmem [#allocation14], %s493
        %v496 = vld [vmem:[#allocation5] sm:$0xff]
        %v497 = vld [vmem:[#allocation5 + $0x8] sm:$0xff]
        %v498 = vld [vmem:[#allocation5 + $0x10] sm:$0xff]
        %v499 = vld [vmem:[#allocation5 + $0x18] sm:$0xff]
        %v500 = vld [vmem:[#allocation5 + $0x20] sm:$0xff]
        %v501 = vld [vmem:[#allocation5 + $0x28] sm:$0xff]
        %v502 = vld [vmem:[#allocation5 + $0x30] sm:$0xff]
        %v503 = vld [vmem:[#allocation5 + $0x38] sm:$0xff]
        %v504 = vld [vmem:[#allocation5 + $0x40] sm:$0xff]
        %v505 = vld [vmem:[#allocation5 + $0x48] sm:$0xff]
        %v506 = vld [vmem:[#allocation5 + $0x50] sm:$0xff]
        %v507 = vld [vmem:[#allocation5 + $0x58] sm:$0xff]
        %v508 = vld [vmem:[#allocation5 + $0x60] sm:$0xff]
        %v509 = vld [vmem:[#allocation5 + $0x68] sm:$0xff]
        %v510 = vld [vmem:[#allocation5 + $0x70] sm:$0xff]
        %v511 = vld [vmem:[#allocation5 + $0x78] sm:$0xff]
        %v512 = vld [vmem:[%s422] sm:$0xff]
        %v513 = vld [vmem:[%s422 + $0x8] sm:$0xff]
        %v514 = vld [vmem:[%s422 + $0x10] sm:$0xff]
        %v515 = vld [vmem:[%s422 + $0x18] sm:$0xff]
        %v516 = vld [vmem:[%s422 + $0x20] sm:$0xff]
        %v517 = vld [vmem:[%s422 + $0x28] sm:$0xff]
        %v518 = vld [vmem:[%s422 + $0x30] sm:$0xff]
        %v519 = vld [vmem:[%s422 + $0x38] sm:$0xff]
        %v520 = vld [vmem:[%s422 + $0x40] sm:$0xff]
        %v521 = vld [vmem:[%s422 + $0x48] sm:$0xff]
        %v522 = vld [vmem:[%s422 + $0x50] sm:$0xff]
        %v523 = vld [vmem:[%s422 + $0x58] sm:$0xff]
        %v524 = vld [vmem:[%s422 + $0x60] sm:$0xff]
        %v525 = vld [vmem:[%s422 + $0x68] sm:$0xff]
        %v526 = vld [vmem:[%s422 + $0x70] sm:$0xff]
        %v527 = vld [vmem:[%s422 + $0x78] sm:$0xff]
        %v528 = vmul.f32 %v512, 0.1
        %v529 = vmul.f32 %v513, 0.1
        %v530 = vmul.f32 %v514, 0.1
        %v531 = vmul.f32 %v515, 0.1
        %v532 = vmul.f32 %v516, 0.1
        %v533 = vmul.f32 %v517, 0.1
        %v534 = vmul.f32 %v518, 0.1
        %v535 = vmul.f32 %v519, 0.1
        %v536 = vmul.f32 %v520, 0.1
        %v537 = vmul.f32 %v521, 0.1
        %v538 = vmul.f32 %v522, 0.1
        %v539 = vmul.f32 %v523, 0.1
        %v540 = vmul.f32 %v524, 0.1
        %v541 = vmul.f32 %v525, 0.1
        %v542 = vmul.f32 %v526, 0.1
        %v543 = vmul.f32 %v527, 0.1
        %v544 = vadd.f32 %v496, %v528
        %v545 = vadd.f32 %v497, %v529
        %v546 = vadd.f32 %v498, %v530
        %v547 = vadd.f32 %v499, %v531
        %v548 = vadd.f32 %v500, %v532
        %v549 = vadd.f32 %v501, %v533
        %v550 = vadd.f32 %v502, %v534
        %v551 = vadd.f32 %v503, %v535
        %v552 = vadd.f32 %v504, %v536
        %v553 = vadd.f32 %v505, %v537
        %v554 = vadd.f32 %v506, %v538
        %v555 = vadd.f32 %v507, %v539
        %v556 = vadd.f32 %v508, %v540
        %v557 = vadd.f32 %v509, %v541
        %v558 = vadd.f32 %v510, %v542
        %v559 = vadd.f32 %v511, %v543
        %v560 = vld [vmem:[%s2] sm:$0x1]
        %v561 = vld [vmem:[%s430] sm:$0x1]
        %v562 = vmul.f32 %v561, 0.1
        %v563 = vadd.f32 %v560, %v562
        %v564 = vld [vmem:[#allocation7] sm:$0xff]
        %v565 = vld [vmem:[#allocation7 + $0x8] sm:$0xff]
        %v566 = vld [vmem:[#allocation7 + $0x10] sm:$0xff]
        %v567 = vld [vmem:[#allocation7 + $0x18] sm:$0xff]
        %v568 = vld [vmem:[#allocation7 + $0x20] sm:$0xff]
        %v569 = vld [vmem:[#allocation7 + $0x28] sm:$0xff]
        %v570 = vld [vmem:[#allocation7 + $0x30] sm:$0xff]
        %v571 = vld [vmem:[#allocation7 + $0x38] sm:$0xff]
        %v572 = vld [vmem:[#allocation7 + $0x40] sm:$0xff]
        %v573 = vld [vmem:[#allocation7 + $0x48] sm:$0xff]
        %v574 = vld [vmem:[#allocation7 + $0x50] sm:$0xff]
        %v575 = vld [vmem:[#allocation7 + $0x58] sm:$0xff]
        %v576 = vld [vmem:[#allocation7 + $0x60] sm:$0xff]
        %v577 = vld [vmem:[#allocation7 + $0x68] sm:$0xff]
        %v578 = vld [vmem:[#allocation7 + $0x70] sm:$0xff]
        %v579 = vld [vmem:[#allocation7 + $0x78] sm:$0xff]
        %v580 = vld [vmem:[%s439] sm:$0xff]
        %v581 = vld [vmem:[%s439 + $0x8] sm:$0xff]
        %v582 = vld [vmem:[%s439 + $0x10] sm:$0xff]
        %v583 = vld [vmem:[%s439 + $0x18] sm:$0xff]
        %v584 = vld [vmem:[%s439 + $0x20] sm:$0xff]
        %v585 = vld [vmem:[%s439 + $0x28] sm:$0xff]
        %v586 = vld [vmem:[%s439 + $0x30] sm:$0xff]
        %v587 = vld [vmem:[%s439 + $0x38] sm:$0xff]
        %v588 = vld [vmem:[%s439 + $0x40] sm:$0xff]
        %v589 = vld [vmem:[%s439 + $0x48] sm:$0xff]
        %v590 = vld [vmem:[%s439 + $0x50] sm:$0xff]
        %v591 = vld [vmem:[%s439 + $0x58] sm:$0xff]
        %v592 = vld [vmem:[%s439 + $0x60] sm:$0xff]
        %v593 = vld [vmem:[%s439 + $0x68] sm:$0xff]
        %v594 = vld [vmem:[%s439 + $0x70] sm:$0xff]
        %v595 = vld [vmem:[%s439 + $0x78] sm:$0xff]
        %v596 = vmul.f32 %v580, 0.1
        %v597 = vmul.f32 %v581, 0.1
        %v598 = vmul.f32 %v582, 0.1
        %v599 = vmul.f32 %v583, 0.1
        %v600 = vmul.f32 %v584, 0.1
        %v601 = vmul.f32 %v585, 0.1
        %v602 = vmul.f32 %v586, 0.1
        %v603 = vmul.f32 %v587, 0.1
        %v604 = vmul.f32 %v588, 0.1
        %v605 = vmul.f32 %v589, 0.1
        %v606 = vmul.f32 %v590, 0.1
        %v607 = vmul.f32 %v591, 0.1
        %v608 = vmul.f32 %v592, 0.1
        %v609 = vmul.f32 %v593, 0.1
        %v610 = vmul.f32 %v594, 0.1
        %v611 = vmul.f32 %v595, 0.1
        %v612 = vadd.f32 %v564, %v596
        %v613 = vadd.f32 %v565, %v597
        %v614 = vadd.f32 %v566, %v598
        %v615 = vadd.f32 %v567, %v599
        %v616 = vadd.f32 %v568, %v600
        %v617 = vadd.f32 %v569, %v601
        %v618 = vadd.f32 %v570, %v602
        %v619 = vadd.f32 %v571, %v603
        %v620 = vadd.f32 %v572, %v604
        %v621 = vadd.f32 %v573, %v605
        %v622 = vadd.f32 %v574, %v606
        %v623 = vadd.f32 %v575, %v607
        %v624 = vadd.f32 %v576, %v608
        %v625 = vadd.f32 %v577, %v609
        %v626 = vadd.f32 %v578, %v610
        %v627 = vadd.f32 %v579, %v611
        %v628 = vld [vmem:[%s4] sm:$0x1]
        %v629 = vld [vmem:[%s447] sm:$0x1]
        %v630 = vmul.f32 %v629, 0.1
        %v631 = vadd.f32 %v628, %v630
        %v632 = vld [vmem:[#allocation2] sm:$0xff]
        %v633 = vpack.c.bf16 %v632, %v632
        %v634 = vpack.c.bf16 %v545, %v544
        %v635 = vpack.c.bf16 %v547, %v546
        %v636 = vpack.c.bf16 %v549, %v548
        %v637 = vpack.c.bf16 %v551, %v550
        %v638 = vpack.c.bf16 %v553, %v552
        %v639 = vpack.c.bf16 %v555, %v554
        %v640 = vpack.c.bf16 %v557, %v556
        %v641 = vpack.c.bf16 %v559, %v558
        %v643 = vlaneseq
        %v644 = vshrl.u32 %v643, 7
        %v645 = vsub.s32 0, %v644
        %v646 = vrot.slane %v563, %v645
        %648 = vmatprep.subr.bf16.mxu0 0
        %649 = vmatpush1.bf16.msra.mxu0 %v641
        %650 = vmatprep.subr.bf16.mxu0 0
        %651 = vmatpush1.bf16.msra.mxu0 %v640
        %652 = vmatprep.subr.bf16.mxu0 0
        %653 = vmatpush1.bf16.msra.mxu0 %v639
        %654 = vmatprep.subr.bf16.mxu0 0
        %655 = vmatpush1.bf16.msra.mxu0 %v638
        %656 = vmatprep.subr.bf16.mxu0 0
        %657 = vmatpush1.bf16.msra.mxu0 %v637
        %658 = vmatprep.subr.bf16.mxu0 0
        %659 = vmatpush1.bf16.msra.mxu0 %v636
        %660 = vmatprep.subr.bf16.mxu0 0
        %661 = vmatpush1.bf16.msra.mxu0 %v635
        %662 = vmatprep.subr.bf16.mxu0 0
        %663 = vmatpush1.bf16.msra.mxu0 %v634
        %664 = vmatprep.subr.bf16.mxu0 0
        %665 = vmatpush2.bf16.msra.mxu0 0
        %666 = vmatprep.subr.bf16.mxu0 0
        %667 = vmatpush2.bf16.msra.mxu0 0
        %668 = vmatprep.subr.bf16.mxu0 0
        %669 = vmatpush2.bf16.msra.mxu0 0
        %670 = vmatprep.subr.bf16.mxu0 0
        %671 = vmatpush2.bf16.msra.mxu0 0
        %672 = vmatprep.subr.bf16.mxu0 0
        %673 = vmatpush2.bf16.msra.mxu0 0
        %674 = vmatprep.subr.bf16.mxu0 0
        %675 = vmatpush2.bf16.msra.mxu0 0
        %676 = vmatprep.subr.bf16.mxu0 0
        %677 = vmatpush2.bf16.msra.mxu0 0
        %678 = vmatprep.subr.bf16.mxu0 0
        %679 = vmatpush2.bf16.msra.mxu0 0
        %680 = vmatprep.mubr.bf16.mxu0 0
        %681 = vmatmul.mubr.bf16.gmra.mxu0 %v633
        %v682 = vpop.f32.mrf.mxu0
        %v683 = vadd.f32 %v646, %v682
        %v684 = vpop.f32.mrf.mxu0
        %v685 = vpop.f32.mrf.mxu0
        %v686 = vpop.f32.mrf.mxu0
        %687 = vdwg.mxu0
        %v688 = vmax.f32 %v683, 0.0
        %v689 = vpack.c.bf16 %v688, %v688
        %v690 = vpack.c.bf16 %v613, %v612
        %v691 = vpack.c.bf16 %v615, %v614
        %v692 = vpack.c.bf16 %v617, %v616
        %v693 = vpack.c.bf16 %v619, %v618
        %v694 = vpack.c.bf16 %v621, %v620
        %v695 = vpack.c.bf16 %v623, %v622
        %v696 = vpack.c.bf16 %v625, %v624
        %v697 = vpack.c.bf16 %v627, %v626
        %v699 = vlaneseq
        %v700 = vshrl.u32 %v699, 7
        %v701 = vsub.s32 0, %v700
        %v702 = vrot.slane %v631, %v701
        %704 = vmatprep.subr.bf16.mxu0 0
        %705 = vmatpush1.bf16.msra.mxu0 %v697
        %706 = vmatprep.subr.bf16.mxu0 0
        %707 = vmatpush1.bf16.msra.mxu0 %v696
        %708 = vmatprep.subr.bf16.mxu0 0
        %709 = vmatpush1.bf16.msra.mxu0 %v695
        %710 = vmatprep.subr.bf16.mxu0 0
        %711 = vmatpush1.bf16.msra.mxu0 %v694
        %712 = vmatprep.subr.bf16.mxu0 0
        %713 = vmatpush1.bf16.msra.mxu0 %v693
        %714 = vmatprep.subr.bf16.mxu0 0
        %715 = vmatpush1.bf16.msra.mxu0 %v692
        %716 = vmatprep.subr.bf16.mxu0 0
        %717 = vmatpush1.bf16.msra.mxu0 %v691
        %718 = vmatprep.subr.bf16.mxu0 0
        %719 = vmatpush1.bf16.msra.mxu0 %v690
        %720 = vmatprep.subr.bf16.mxu0 0
        %721 = vmatpush2.bf16.msra.mxu0 0
        %722 = vmatprep.subr.bf16.mxu0 0
        %723 = vmatpush2.bf16.msra.mxu0 0
        %724 = vmatprep.subr.bf16.mxu0 0
        %725 = vmatpush2.bf16.msra.mxu0 0
        %726 = vmatprep.subr.bf16.mxu0 0
        %727 = vmatpush2.bf16.msra.mxu0 0
        %728 = vmatprep.subr.bf16.mxu0 0
        %729 = vmatpush2.bf16.msra.mxu0 0
        %730 = vmatprep.subr.bf16.mxu0 0
        %731 = vmatpush2.bf16.msra.mxu0 0
        %732 = vmatprep.subr.bf16.mxu0 0
        %733 = vmatpush2.bf16.msra.mxu0 0
        %734 = vmatprep.subr.bf16.mxu0 0
        %735 = vmatpush2.bf16.msra.mxu0 0
        %736 = vmatprep.mubr.bf16.mxu0 0
        %737 = vmatmul.mubr.bf16.gmra.mxu0 %v689
        %v738 = vpop.f32.mrf.mxu0
        %v739 = vadd.f32 %v702, %v738
        %v740 = vpop.f32.mrf.mxu0
        %v741 = vpop.f32.mrf.mxu0
        %v742 = vpop.f32.mrf.mxu0
        %743 = vdwg.mxu0
        %744 = vst [vmem:[%s494] sm:$0xff] %v739
        %s745 = sand.u32 %s248, 1
        %s746 = scalar_lea.sflag [#allocation4], %s745
        %s747 = sand.u32 %s248, 1
        %s748 = smul.addr %s747, 8
        %s749 = scalar_lea.vmem [#allocation14], %s748
        // Predicated region
        $region85: #{tpu_custom_call.1} parent=55 // pred_check
          %p750 = pneg %p258
        $region86: #{tpu_custom_call.1} parent=55 // pred_check_branch
          %752 = sbr.rel (%p750) target = $region88
        $region87: #{tpu_custom_call.1} parent=55 // pred_region
          %s754 = ssub.s32 128, 128
          %755 = vsyncadd %s746, %s754
          %s756 = smul.addr %s31, 128
          %s757 = scalar_lea.hbm %s9, %s756
          %s759 = sshll.u32 %s749, 4
          %s760 = int_to_ptr.vmem [resolvable:$true] %s759
          %762 = dma.vmem_to_hbm [thread:$0]  %s760, 128, %s757, %s746
        $region88: #{tpu_custom_call.1} parent=55 // pred_fallthru
          _
      $region56: #{tpu_custom_call.1} parent=5 // pred_fallthru
        _
      %p763 = scmp.le.s32.totalorder 2, %s26
      // Predicated region
      $region89: #{tpu_custom_call.1} parent=5 // pred_check
        %p764 = pneg %p763
      $region90: #{tpu_custom_call.1} parent=5 // pred_check_branch
        %766 = sbr.rel (%p764) target = $region92
      $region91: #{tpu_custom_call.1} parent=5 // pred_region
        %s767 = ssub.s32 %s26, 2
        // Predicated region
        $region93: #{tpu_custom_call.1} parent=91 // pred_check
          %p768 = pneg %p264
        $region94: #{tpu_custom_call.1} parent=91 // pred_check_branch
          %770 = sbr.rel (%p768) target = $region96
        $region95: #{tpu_custom_call.1} parent=91 // pred_region
          %s771 = sand.u32 %s249, 1
          %s772 = scalar_lea.sflag [#allocation4], %s771
          %s773 = sand.u32 %s249, 1
          %s774 = smul.addr %s773, 8
          %s775 = scalar_lea.vmem [#allocation14], %s774
          %776 = dma.done %s772, 128
        $region96: #{tpu_custom_call.1} parent=91 // pred_fallthru
          _
      $region92: #{tpu_custom_call.1} parent=5 // pred_fallthru
        _
    $region6: #{tpu_custom_call.1} parent=1 // loop_footer
      %s30 = sadd.s32 1, %s26
    $region7: #{tpu_custom_call.1} parent=1 // loop_footer_branch
      %25 = sbr.rel target = $region3
    $region8: #{tpu_custom_call.1} parent=1 // loop_exit
      _
    %777 = vsyncpa [#allocation3], 1
    %s778 = scalar_lea.sflag [#allocation3], 1
    %779 = vsyncpa %s778, 1
    %780 = vsyncpa [#allocation6], 1
    %781 = vsyncpa [#allocation9], 1
    %s782 = scalar_lea.sflag [#allocation9], 1
    %783 = vsyncpa %s782, 1
    %784 = vsyncpa [#allocation12], 1
    %s785 = scalar_lea.sflag [#allocation12], 1
    %786 = vsyncpa %s785, 1
    %787 = vsyncpa [#allocation4], 1
    %s788 = scalar_lea.sflag [#allocation4], 1
    %789 = vsyncpa %s788, 1

</llo_original>
